<compile_context>
chip_gen: v7x
topology: tpu7x:2x2x1
jax: 0.10.0
libtpu: 0.0.40
codegen_flags: <defaults>
</compile_context>

<pallas_src>
import jax
import jax.numpy as jnp
from jax.experimental import pallas as pl
from jax.experimental.pallas import tpu as pltpu


# Tile caps, aligned to the TPU vreg tile (8 sublanes x 128 lanes).
_ROW_TILE = 256    # multiple of 8/16/32 -> valid sublane tiling for any dtype
_LEN_TILE = 2048   # multiple of 128 -> lane-dense, unmasked stores


def _copy_kernel(x_ref, o_ref):
    # When the input and output blocks have the same shape this is a plain
    # tile copy; otherwise it copies the kept prefix of the length axis
    # (only used in the small, single-tile fallback path).
    o_ref[...] = x_ref[:, : o_ref.shape[-1]]


def chomp1d(x: jax.Array, chomp_size: int) -> jax.Array:
    """Pallas equivalent of PyTorch Chomp1d(chomp_size)(x) for x of shape (N, C, L)."""
    n, c, l = x.shape
    if not (0 < chomp_size < l):
        # PyTorch's x[:, :, :-0] would return an EMPTY tensor; Chomp1d is only
        # meaningful for 0 < chomp_size < L, so require it explicitly.
        raise ValueError(
            f"chomp_size must satisfy 0 < chomp_size < L, got "
            f"chomp_size={chomp_size}, L={l}"
        )
    l_out = l - chomp_size

    # Collapse batch and channels into one row axis (free for contiguous NCL).
    rows = n * c
    x2 = x.reshape(rows, l)

    # Row tiling: full extent if it fits one block, else aligned 256-row tiles.
    tile_rows = rows if rows <= _ROW_TILE else _ROW_TILE
    grid_rows = pl.cdiv(rows, tile_rows)

    # Length tiling.
    if l_out > _LEN_TILE:
        # Large outputs: lane-aligned tiles for both input and output.  The
        # chomped tail beyond the last needed tile is never DMA'd from HBM.
        in_tile_len = out_tile_len = _LEN_TILE
    else:
        out_tile_len = l_out  # equals the full output dim -> always valid
        # DMA-level chomp when the kept prefix is lane-aligned; otherwise read
        # the (small) full length and slice the prefix inside the kernel.
        in_tile_len = l_out if l_out % 128 == 0 else l
    grid_len = pl.cdiv(l_out, out_tile_len)

    itemsize = jnp.dtype(x.dtype).itemsize
    cost = pl.CostEstimate(
        flops=0,
        transcendentals=0,
        bytes_accessed=rows * (min(grid_len * in_tile_len, l) + l_out) * itemsize,
    )

    out2 = pl.pallas_call(
        _copy_kernel,
        out_shape=jax.ShapeDtypeStruct((rows, l_out), x.dtype),
        grid_spec=pltpu.PrefetchScalarGridSpec(
            num_scalar_prefetch=0,
            grid=(grid_rows, grid_len),
            in_specs=[pl.BlockSpec((tile_rows, in_tile_len), lambda r, j: (r, j))],
            out_specs=pl.BlockSpec((tile_rows, out_tile_len), lambda r, j: (r, j)),
        ),
        compiler_params=pltpu.CompilerParams(
            dimension_semantics=("parallel", "parallel"),
        ),
        cost_estimate=cost,
    )(x2)

    return out2.reshape(n, c, l_out)


def _check(key, shape, chomp_size, dtype=jnp.float32):
    x = jax.random.normal(key, shape, dtype=dtype)
    out = jax.block_until_ready(chomp1d(x, chomp_size))
    ref = x[:, :, : shape[-1] - chomp_size]
    assert out.shape == ref.shape, (out.shape, ref.shape)
    assert out.dtype == x.dtype
    assert jnp.array_equal(out, ref), f"mismatch for shape={shape}, chomp={chomp_size}"


if __name__ == "__main__":
    key = jax.random.PRNGKey(0)
    k1, k2, k3 = jax.random.split(key, 3)

    # Small TCN-style shape (primary test): (N, C, L) = (2, 4, 16), chomp=3.
    # Exercises the single-tile fallback path (unaligned prefix).
    _check(k1, (2, 4, 16), chomp_size=3)

    # Lane-aligned prefix -> DMA-level chomp, single length tile.
    _check(k2, (2, 4, 261), chomp_size=5)  # l_out = 256 (multiple of 128)

    # Larger case -> row tiling (320 rows) + multi-tile length with a partial
    # final (masked) output tile.
    _check(k3, (4, 80, 2200), chomp_size=100)  # l_out = 2100 > _LEN_TILE

    print("KERNEL_OK")
</pallas_src>

<mosaic_0001>
module attributes {stable_mosaic.version = 11 : i64} {
  func.func @_copy_kernel(%arg0: i32, %arg1: i32, %arg2: memref<8x16xf32, #tpu.memory_space<vmem>>, %arg3: memref<8x13xf32, #tpu.memory_space<vmem>>) attributes {dimension_semantics = [#tpu.dimension_semantics<parallel>, #tpu.dimension_semantics<parallel>], iteration_bounds = array<i64: 1, 1>, scalar_prefetch = 0 : i64, scratch_operands = 0 : i64, tpu.core_type = #tpu.core_type<tc>, window_params = [{transform_indices = @transform_0, window_bounds = array<i64: 8, 16>}, {transform_indices = @transform_1, window_bounds = array<i64: 8, 13>}]} {
    %c0 = arith.constant 0 : index
    %c0_0 = arith.constant 0 : index
    %0 = vector.load %arg2[%c0, %c0_0] : memref<8x16xf32, #tpu.memory_space<vmem>>, vector<8x13xf32>
    %c0_1 = arith.constant 0 : index
    %c0_2 = arith.constant 0 : index
    %1 = vector.load %arg3[%c0_1, %c0_2] : memref<8x13xf32, #tpu.memory_space<vmem>>, vector<8x13xf32>
    tpu.vector_store %arg3[%c0_1, %c0_2], %0 {strides = array<i32>} : memref<8x13xf32, #tpu.memory_space<vmem>>, vector<8x13xf32>,
    return
  }
  func.func @transform_0(%arg0: i32, %arg1: i32) -> (i32, i32) {
    %c0_i32 = arith.constant 0 : i32
    return %arg0, %arg1 : i32, i32
  }
  func.func @transform_1(%arg0: i32, %arg1: i32) -> (i32, i32) {
    %c0_i32 = arith.constant 0 : i32
    return %arg0, %arg1 : i32, i32
  }
}

</mosaic_0001>

<llo_original>
// kernel: tpu_custom_call.1
$region0: #{tpu_custom_call.1}
  #allocation0 [shape = 'u32[]', space=smem, size = 0x4, offset = 0x4, fixed_abs, tag = 'smem constant byte address 0x4 - core index']
  #allocation1 [shape = 'u32[144,128]{1,0:T(1,128)}', space=vmem, size = 0x12000, scoped, tag = 'internal scratch']
  %s0 = inlined_call_operand.hbm [shape: f32[8,16], index: 0, kind: input, shape index: {}]
  %s1 = inlined_call_operand.hbm [shape: f32[8,13], index: 1, kind: output, shape index: {}]
  %s2 = sld [smem:[#allocation0]]
  $region18: #{tpu_custom_call.1} parent=0
    _
  %s4 = ssub.s32 1, %s2
  %s5 = scalar_select 0, %s4, %s2
  $region1: #{tpu_custom_call.1} parent=0
    #allocation2 [shape = 'u8[4096]{0}', space=vmem, size = 0x1000, scoped, tag = 'input window, operand 0, single buffered']
    #allocation3 [shape = 's32[1]{0}', space=sflag, size = 0x4, scoped, tag = 'scoped memory for tpu_custom_call.1']
    #allocation4 [shape = 's32[1]{0}', space=sflag, size = 0x4, scoped, tag = 'scoped memory for tpu_custom_call.1']
    #allocation5 [shape = 'u8[4096]{0}', space=vmem, size = 0x1000, scoped, tag = 'output window, operand 0, single buffered']
    %6 = vsyncpa [#allocation3], 0
    %7 = vsyncpa [#allocation4], 0
    // Predicated region
    $region2: #{tpu_custom_call.1} parent=1 // pred_check
      _
    $region3: #{tpu_custom_call.1} parent=1 // pred_check_branch
      %9 = sbr.rel (0) target = $region5
    $region4: #{tpu_custom_call.1} parent=1 // pred_region
      %s11 = ssub.s32 128, 128
      %12 = vsyncadd [#allocation3], %s11
      %s14 = sshll.u32 [#allocation2], 4
      %s15 = int_to_ptr.vmem [resolvable:$true] %s14
      %17 = dma.hbm_to_vmem [thread:$0]  %s0, 128, %s15, [#allocation3]
    $region5: #{tpu_custom_call.1} parent=1 // pred_fallthru
      _
    // Predicated region
    $region6: #{tpu_custom_call.1} parent=1 // pred_check
      _
    $region7: #{tpu_custom_call.1} parent=1 // pred_check_branch
      %19 = sbr.rel (0) target = $region9
    $region8: #{tpu_custom_call.1} parent=1 // pred_region
      %20 = dma.done [#allocation3], 128
    $region9: #{tpu_custom_call.1} parent=1 // pred_fallthru
      _
    %v21 = vld [vmem:[#allocation2] sm:$0xff]
    %vm22 = vcmask 105472
    %23 = vst.msk [vmem:[#allocation5] sm:$0xff] %vm22, %v21
    // Predicated region
    $region10: #{tpu_custom_call.1} parent=1 // pred_check
      _
    $region11: #{tpu_custom_call.1} parent=1 // pred_check_branch
      %25 = sbr.rel (0) target = $region13
    $region12: #{tpu_custom_call.1} parent=1 // pred_region
      %s27 = ssub.s32 128, 128
      %28 = vsyncadd [#allocation4], %s27
      %s30 = sshll.u32 [#allocation5], 4
      %s31 = int_to_ptr.vmem [resolvable:$true] %s30
      %33 = dma.vmem_to_hbm [thread:$0]  %s31, 128, %s1, [#allocation4]
    $region13: #{tpu_custom_call.1} parent=1 // pred_fallthru
      _
    // Predicated region
    $region14: #{tpu_custom_call.1} parent=1 // pred_check
      _
    $region15: #{tpu_custom_call.1} parent=1 // pred_check_branch
      %35 = sbr.rel (0) target = $region17
    $region16: #{tpu_custom_call.1} parent=1 // pred_region
      %36 = dma.done [#allocation4], 128
    $region17: #{tpu_custom_call.1} parent=1 // pred_fallthru
      _
    %37 = vsyncpa [#allocation3], 1
    %38 = vsyncpa [#allocation4], 1

</llo_original>
